<compile_context>
chip_gen: v5e
topology: v5e:2x2
jax: 0.10.0
libtpu: 0.0.40
codegen_flags: <defaults>
</compile_context>

<pallas_src>
import functools

import jax
import jax.numpy as jnp
from jax import lax
from jax.experimental import pallas as pl
from jax.experimental.pallas import tpu as pltpu

BN_EPS = 1e-5   # PyTorch BatchNorm1d default
LANE = 128      # TPU lane width; weights / hidden / output lane-padded to this


def _bn_act(h, gamma, beta, inv_b, act):
    # Fused BatchNorm1d (training-mode, biased variance) + activation.
    # Single XLU reduce over [h | h*h] -> (1, 2*LANE); multiply by the
    # compile-time 1/B instead of dividing.
    s = jnp.sum(jnp.concatenate([h, h * h], axis=1), axis=0, keepdims=True) * inv_b
    mu = s[:, :LANE]
    var = s[:, LANE:] - mu * mu                       # E[h^2] - mu^2 (biased)
    scale = gamma * lax.rsqrt(var + BN_EPS)           # EUP rsqrt
    shift = beta - mu * scale
    return act(h * scale + shift)


def mlp_kernel(x_ref, w_ref, v_ref, o_ref):
    # x_ref: (B, in_dim)     unpadded input (full-array VMEM block)
    # w_ref: (3, 128, 128)   [w1; w2; w3] pre-transposed to (in, out), zero-padded
    # v_ref: (8, 128)        rows = [b1, g1, be1, b2, g2, be2, b3, unused]
    # o_ref: (B, 128)        lane-dense output; real columns sliced in wrapper
    B, in_dim = x_ref.shape
    inv_b = 1.0 / B                                   # compile-time constant

    x = x_ref[...]
    v = v_ref[...]                                    # one full load of the slab
    b1, g1, be1 = v[0:1], v[1:2], v[2:3]
    b2, g2, be2 = v[3:4], v[4:5], v[5:6]
    b3 = v[6:7]

    # ---- hidden layer 1: Linear -> BatchNorm1d (train, fused) -> ReLU ------
    w1 = w_ref[0, :in_dim, :]                         # static sublane slice (in_dim % 8 == 0)
    h = jnp.dot(x, w1, preferred_element_type=jnp.float32) + b1
    h = _bn_act(h, g1, be1, inv_b, lambda t: jnp.maximum(t, 0.0))

    # ---- hidden layer 2: Linear -> BatchNorm1d (train, fused) -> Tanh ------
    h = jnp.dot(h, w_ref[1], preferred_element_type=jnp.float32) + b2
    h = _bn_act(h, g2, be2, inv_b, jnp.tanh)

    # ---- output layer: Linear (lane-dense store; padded cols stay 0) -------
    o_ref[...] = jnp.dot(h, w_ref[2], preferred_element_type=jnp.float32) + b3


# ---------------------------------------------------------------------------
# One-time parameter packing (model-load time, NOT per forward call).
# ---------------------------------------------------------------------------
def _pad2(m, rows, cols):
    return jnp.zeros((rows, cols), jnp.float32).at[: m.shape[0], : m.shape[1]].set(m)


def _padrow(v):
    return jnp.zeros((LANE,), jnp.float32).at[: v.shape[0]].set(v)


def pack_params(params):
    """Build the two (8,128)-aligned slabs once; pass them to every forward."""
    w_slab = jnp.stack([
        _pad2(params["w1"].T, LANE, LANE),
        _pad2(params["w2"].T, LANE, LANE),
        _pad2(params["w3"].T, LANE, LANE),
    ], axis=0)
    v_slab = jnp.stack([
        _padrow(params["b1"]), _padrow(params["gamma1"]), _padrow(params["beta1"]),
        _padrow(params["b2"]), _padrow(params["gamma2"]), _padrow(params["beta2"]),
        _padrow(params["b3"]), jnp.zeros((LANE,), jnp.float32),
    ], axis=0)
    return w_slab, v_slab


@functools.partial(jax.jit, static_argnames=("out_dim",))
def neural_net_forward(x, w_slab, v_slab, out_dim):
    """x: (B, in_dim) f32; w_slab/v_slab from pack_params(); out_dim: static int."""
    B, in_dim = x.shape
    vmem = pl.BlockSpec(memory_space=pltpu.MemorySpace.VMEM)
    out_pad = pl.pallas_call(
        mlp_kernel,
        out_shape=jax.ShapeDtypeStruct((B, LANE), jnp.float32),
        in_specs=[vmem, vmem, vmem],
        out_specs=vmem,
        cost_estimate=pl.CostEstimate(
            flops=2 * B * LANE * (in_dim + 2 * LANE),
            transcendentals=3 * B * LANE,
            bytes_accessed=4 * (B * in_dim + w_slab.size + v_slab.size + B * LANE),
        ),
    )(x, w_slab, v_slab)
    return out_pad[:, :out_dim]


# ---------------------------------------------------------------------------
# Pure-JAX reference (mirrors PyTorch semantics) + deterministic init.
# ---------------------------------------------------------------------------
def neural_net_reference(x, params):
    h = x @ params["w1"].T + params["b1"]
    mu = h.mean(0); var = ((h - mu) ** 2).mean(0)
    h = (h - mu) / jnp.sqrt(var + BN_EPS) * params["gamma1"] + params["beta1"]
    h = jnp.maximum(h, 0.0)
    h = h @ params["w2"].T + params["b2"]
    mu = h.mean(0); var = ((h - mu) ** 2).mean(0)
    h = (h - mu) / jnp.sqrt(var + BN_EPS) * params["gamma2"] + params["beta2"]
    h = jnp.tanh(h)
    return h @ params["w3"].T + params["b3"]


def init_params(key, input_size, hidden1, hidden2, output_size):
    # Deterministic synthetic init (stand-in for opt.initialization).
    ks = jax.random.split(key, 6)
    return {
        "w1": jax.random.normal(ks[0], (hidden1, input_size), jnp.float32) * 0.2,
        "b1": jax.random.normal(ks[1], (hidden1,), jnp.float32) * 0.1,
        "gamma1": jnp.ones((hidden1,), jnp.float32),   # BN defaults
        "beta1": jnp.zeros((hidden1,), jnp.float32),
        "w2": jax.random.normal(ks[2], (hidden2, hidden1), jnp.float32) * 0.2,
        "b2": jax.random.normal(ks[3], (hidden2,), jnp.float32) * 0.1,
        "gamma2": jnp.ones((hidden2,), jnp.float32),
        "beta2": jnp.zeros((hidden2,), jnp.float32),
        "w3": jax.random.normal(ks[4], (output_size, hidden2), jnp.float32) * 0.2,
        "b3": jax.random.normal(ks[5], (output_size,), jnp.float32) * 0.1,
    }


if __name__ == "__main__":
    batch, input_size, hidden, output_size = 8, 16, 32, 8

    key = jax.random.PRNGKey(0)
    kx, kp = jax.random.split(key)
    x = jax.random.normal(kx, (batch, input_size), jnp.float32)
    params = init_params(kp, input_size, hidden, hidden, output_size)

    # Packing happens once at "model load"; the forward only runs the kernel.
    w_slab, v_slab = jax.block_until_ready(pack_params(params))

    out = neural_net_forward(x, w_slab, v_slab, output_size)
    out = jax.block_until_ready(out)

    ref = neural_net_reference(x, params)
    assert out.shape == (batch, output_size)
    assert jnp.allclose(out, ref, atol=1e-4, rtol=1e-4), "mismatch vs reference"

    # TODO(synk): BatchNorm running-stats update (training side effect) and
    # stochastic Dropout are not modeled; forward math only.
    print("KERNEL_OK")
</pallas_src>

<mosaic_0001>
module attributes {stable_mosaic.version = 11 : i64} {
  func.func @mlp_kernel(%arg0: memref<8x16xf32, #tpu.memory_space<vmem>>, %arg1: memref<3x128x128xf32, #tpu.memory_space<vmem>>, %arg2: memref<8x128xf32, #tpu.memory_space<vmem>>, %arg3: memref<8x128xf32, #tpu.memory_space<vmem>>) attributes {dimension_semantics = [], scalar_prefetch = 0 : i64, scratch_operands = 0 : i64, tpu.core_type = #tpu.core_type<tc>} {
    %c0 = arith.constant 0 : index
    %c0_0 = arith.constant 0 : index
    %0 = vector.load %arg0[%c0, %c0_0] : memref<8x16xf32, #tpu.memory_space<vmem>>, vector<8x16xf32>
    %c0_1 = arith.constant 0 : index
    %c0_2 = arith.constant 0 : index
    %1 = vector.load %arg2[%c0_1, %c0_2] : memref<8x128xf32, #tpu.memory_space<vmem>>, vector<8x128xf32>
    %2 = vector.extract_strided_slice %1 {offsets = [0, 0], sizes = [1, 128], strides = [1, 1]} : vector<8x128xf32> to vector<1x128xf32>
    %3 = vector.extract_strided_slice %1 {offsets = [1, 0], sizes = [1, 128], strides = [1, 1]} : vector<8x128xf32> to vector<1x128xf32>
    %4 = vector.extract_strided_slice %1 {offsets = [2, 0], sizes = [1, 128], strides = [1, 1]} : vector<8x128xf32> to vector<1x128xf32>
    %5 = vector.extract_strided_slice %1 {offsets = [3, 0], sizes = [1, 128], strides = [1, 1]} : vector<8x128xf32> to vector<1x128xf32>
    %6 = vector.extract_strided_slice %1 {offsets = [4, 0], sizes = [1, 128], strides = [1, 1]} : vector<8x128xf32> to vector<1x128xf32>
    %7 = vector.extract_strided_slice %1 {offsets = [5, 0], sizes = [1, 128], strides = [1, 1]} : vector<8x128xf32> to vector<1x128xf32>
    %8 = vector.extract_strided_slice %1 {offsets = [6, 0], sizes = [1, 128], strides = [1, 1]} : vector<8x128xf32> to vector<1x128xf32>
    %c0_3 = arith.constant 0 : index
    %c0_4 = arith.constant 0 : index
    %c0_5 = arith.constant 0 : index
    %9 = vector.load %arg1[%c0_3, %c0_4, %c0_5] : memref<3x128x128xf32, #tpu.memory_space<vmem>>, vector<1x16x128xf32>
    %10 = vector.shape_cast %9 : vector<1x16x128xf32> to vector<16x128xf32>
    %cst = arith.constant dense<0.000000e+00> : vector<8x128xf32>
    %11 = tpu.matmul %0, %10, %cst {dimension_numbers = #tpu.dot_dimension_numbers<[1], [0], [0], [1], [0, 0, 1, 1], [], []>} : vector<8x16xf32>, vector<16x128xf32>, vector<8x128xf32> -> vector<8x128xf32>
    %12 = vector.broadcast %2 : vector<1x128xf32> to vector<8x128xf32>
    %13 = arith.addf %11, %12 : vector<8x128xf32>
    %14 = arith.mulf %13, %13 : vector<8x128xf32>
    %15 = tpu.concatenate %13, %14 in 1 : vector<8x128xf32>, vector<8x128xf32> -> vector<8x256xf32>
    %cst_6 = arith.constant dense<0.000000e+00> : vector<256xf32>
    %16 = vector.multi_reduction <add>, %15, %cst_6 [0] : vector<8x256xf32> to vector<256xf32>
    %17 = vector.shape_cast %16 : vector<256xf32> to vector<1x256xf32>
    %cst_7 = arith.constant 1.250000e-01 : f32
    %18 = vector.broadcast %cst_7 : f32 to vector<1x256xf32>
    %19 = arith.mulf %17, %18 : vector<1x256xf32>
    %20 = vector.extract_strided_slice %19 {offsets = [0, 0], sizes = [1, 128], strides = [1, 1]} : vector<1x256xf32> to vector<1x128xf32>
    %21 = vector.extract_strided_slice %19 {offsets = [0, 128], sizes = [1, 128], strides = [1, 1]} : vector<1x256xf32> to vector<1x128xf32>
    %22 = arith.mulf %20, %20 : vector<1x128xf32>
    %23 = arith.subf %21, %22 : vector<1x128xf32>
    %cst_8 = arith.constant 9.99999974E-6 : f32
    %24 = vector.broadcast %cst_8 : f32 to vector<1x128xf32>
    %25 = arith.addf %23, %24 : vector<1x128xf32>
    %26 = math.rsqrt %25 : vector<1x128xf32>
    %27 = arith.mulf %3, %26 : vector<1x128xf32>
    %28 = arith.mulf %20, %27 : vector<1x128xf32>
    %29 = arith.subf %4, %28 : vector<1x128xf32>
    %30 = vector.broadcast %27 : vector<1x128xf32> to vector<8x128xf32>
    %31 = arith.mulf %13, %30 : vector<8x128xf32>
    %32 = vector.broadcast %29 : vector<1x128xf32> to vector<8x128xf32>
    %33 = arith.addf %31, %32 : vector<8x128xf32>
    %cst_9 = arith.constant 0.000000e+00 : f32
    %34 = vector.broadcast %cst_9 : f32 to vector<8x128xf32>
    %35 = arith.maximumf %33, %34 : vector<8x128xf32>
    %c1 = arith.constant 1 : index
    %c0_10 = arith.constant 0 : index
    %c0_11 = arith.constant 0 : index
    %36 = vector.load %arg1[%c1, %c0_10, %c0_11] : memref<3x128x128xf32, #tpu.memory_space<vmem>>, vector<1x128x128xf32>
    %37 = vector.shape_cast %36 : vector<1x128x128xf32> to vector<128x128xf32>
    %cst_12 = arith.constant dense<0.000000e+00> : vector<8x128xf32>
    %38 = tpu.matmul %35, %37, %cst_12 {dimension_numbers = #tpu.dot_dimension_numbers<[1], [0], [0], [1], [0, 0, 1, 1], [], []>} : vector<8x128xf32>, vector<128x128xf32>, vector<8x128xf32> -> vector<8x128xf32>
    %39 = vector.broadcast %5 : vector<1x128xf32> to vector<8x128xf32>
    %40 = arith.addf %38, %39 : vector<8x128xf32>
    %41 = arith.mulf %40, %40 : vector<8x128xf32>
    %42 = tpu.concatenate %40, %41 in 1 : vector<8x128xf32>, vector<8x128xf32> -> vector<8x256xf32>
    %cst_13 = arith.constant dense<0.000000e+00> : vector<256xf32>
    %43 = vector.multi_reduction <add>, %42, %cst_13 [0] : vector<8x256xf32> to vector<256xf32>
    %44 = vector.shape_cast %43 : vector<256xf32> to vector<1x256xf32>
    %cst_14 = arith.constant 1.250000e-01 : f32
    %45 = vector.broadcast %cst_14 : f32 to vector<1x256xf32>
    %46 = arith.mulf %44, %45 : vector<1x256xf32>
    %47 = vector.extract_strided_slice %46 {offsets = [0, 0], sizes = [1, 128], strides = [1, 1]} : vector<1x256xf32> to vector<1x128xf32>
    %48 = vector.extract_strided_slice %46 {offsets = [0, 128], sizes = [1, 128], strides = [1, 1]} : vector<1x256xf32> to vector<1x128xf32>
    %49 = arith.mulf %47, %47 : vector<1x128xf32>
    %50 = arith.subf %48, %49 : vector<1x128xf32>
    %cst_15 = arith.constant 9.99999974E-6 : f32
    %51 = vector.broadcast %cst_15 : f32 to vector<1x128xf32>
    %52 = arith.addf %50, %51 : vector<1x128xf32>
    %53 = math.rsqrt %52 : vector<1x128xf32>
    %54 = arith.mulf %6, %53 : vector<1x128xf32>
    %55 = arith.mulf %47, %54 : vector<1x128xf32>
    %56 = arith.subf %7, %55 : vector<1x128xf32>
    %57 = vector.broadcast %54 : vector<1x128xf32> to vector<8x128xf32>
    %58 = arith.mulf %40, %57 : vector<8x128xf32>
    %59 = vector.broadcast %56 : vector<1x128xf32> to vector<8x128xf32>
    %60 = arith.addf %58, %59 : vector<8x128xf32>
    %61 = math.tanh %60 : vector<8x128xf32>
    %c2 = arith.constant 2 : index
    %c0_16 = arith.constant 0 : index
    %c0_17 = arith.constant 0 : index
    %62 = vector.load %arg1[%c2, %c0_16, %c0_17] : memref<3x128x128xf32, #tpu.memory_space<vmem>>, vector<1x128x128xf32>
    %63 = vector.shape_cast %62 : vector<1x128x128xf32> to vector<128x128xf32>
    %cst_18 = arith.constant dense<0.000000e+00> : vector<8x128xf32>
    %64 = tpu.matmul %61, %63, %cst_18 {dimension_numbers = #tpu.dot_dimension_numbers<[1], [0], [0], [1], [0, 0, 1, 1], [], []>} : vector<8x128xf32>, vector<128x128xf32>, vector<8x128xf32> -> vector<8x128xf32>
    %65 = vector.broadcast %8 : vector<1x128xf32> to vector<8x128xf32>
    %66 = arith.addf %64, %65 : vector<8x128xf32>
    %c0_19 = arith.constant 0 : index
    %c0_20 = arith.constant 0 : index
    %67 = vector.load %arg3[%c0_19, %c0_20] : memref<8x128xf32, #tpu.memory_space<vmem>>, vector<8x128xf32>
    tpu.vector_store %arg3[%c0_19, %c0_20], %66 {strides = array<i32>} : memref<8x128xf32, #tpu.memory_space<vmem>>, vector<8x128xf32>,
    return
  }
}

</mosaic_0001>

<llo_original>
// kernel: neural_net_forward.1
$region0: #{neural_net_forward.1}
  #allocation0 [shape = 'u32[]', space=smem, size = 0x4, offset = 0x4, fixed_abs, tag = 'smem constant byte address 0x4 - core index']
  #allocation1 [shape = 'u32[72,128]{1,0:T(1,128)}', space=vmem, size = 0x9000, scoped, tag = 'internal scratch']
  %s0 = inlined_call_operand.hbm [shape: f32[8,16], index: 0, kind: input, shape index: {}]
  %s1 = inlined_call_operand.hbm [shape: f32[3,128,128], index: 1, kind: input, shape index: {}]
  %s2 = inlined_call_operand.hbm [shape: f32[8,128], index: 2, kind: input, shape index: {}]
  %s3 = inlined_call_operand.hbm [shape: f32[8,128], index: 3, kind: output, shape index: {}]
  %s4 = sld [smem:[#allocation0]]
  $region34: #{neural_net_forward.1} parent=0
    _
  %s6 = ssub.s32 1, %s4
  %s7 = scalar_select 0, %s6, %s4
  $region1: #{neural_net_forward.1} parent=0
    #allocation2 [shape = 'u8[4096]{0}', space=vmem, size = 0x1000, scoped, tag = 'input window, operand 0, single buffered']
    #allocation3 [shape = 's32[1]{0}', space=sflag, size = 0x4, scoped, tag = 'scoped memory for neural_net_forward.1']
    #allocation4 [shape = 's32[1]{0}', space=sflag, size = 0x4, scoped, tag = 'scoped memory for neural_net_forward.1']
    #allocation5 [shape = 'u8[196608]{0}', space=vmem, size = 0x30000, scoped, tag = 'input window, operand 1, single buffered']
    #allocation6 [shape = 's32[1]{0}', space=sflag, size = 0x4, scoped, tag = 'scoped memory for neural_net_forward.1']
    #allocation7 [shape = 'u8[4096]{0}', space=vmem, size = 0x1000, scoped, tag = 'input window, operand 2, single buffered']
    #allocation8 [shape = 'u8[4096]{0}', space=vmem, size = 0x1000, scoped, tag = 'output window, operand 0, single buffered']
    %8 = vsyncpa [#allocation3], 0
    %9 = vsyncpa [#allocation6], 0
    %10 = vsyncpa [#allocation4], 0
    // Predicated region
    $region2: #{neural_net_forward.1} parent=1 // pred_check
      _
    $region3: #{neural_net_forward.1} parent=1 // pred_check_branch
      %12 = sbr.rel (0) target = $region5
    $region4: #{neural_net_forward.1} parent=1 // pred_region
      %14 = vsyncadd [#allocation3], 0
      %s16 = sshll.u32 %s0, 4
      %s17 = int_to_ptr.hbm [resolvable:$true] %s16
      %s18 = sshll.u32 [#allocation2], 4
      %s19 = int_to_ptr.vmem [resolvable:$true] %s18
      %21 = dma.hbm_to_vmem [thread:$0]  %s17, 128, %s19, [#allocation3]
    $region5: #{neural_net_forward.1} parent=1 // pred_fallthru
      _
    // Predicated region
    $region6: #{neural_net_forward.1} parent=1 // pred_check
      _
    $region7: #{neural_net_forward.1} parent=1 // pred_check_branch
      %23 = sbr.rel (0) target = $region9
    $region8: #{neural_net_forward.1} parent=1 // pred_region
      %25 = vsyncadd [#allocation6], 0
      %s26 = sshll.u32 %s1, 4
      %s27 = int_to_ptr.hbm [resolvable:$true] %s26
      %s28 = sshll.u32 [#allocation5], 4
      %s29 = int_to_ptr.vmem [resolvable:$true] %s28
      %34 = dma.hbm_to_vmem [thread:$0]  %s27, 6144, %s29, [#allocation6], 128, 128, 8
    $region9: #{neural_net_forward.1} parent=1 // pred_fallthru
      _
    // Predicated region
    $region10: #{neural_net_forward.1} parent=1 // pred_check
      _
    $region11: #{neural_net_forward.1} parent=1 // pred_check_branch
      %36 = sbr.rel (0) target = $region13
    $region12: #{neural_net_forward.1} parent=1 // pred_region
      %38 = vsyncadd [#allocation6], 0
      %s40 = sshll.u32 %s2, 4
      %s41 = int_to_ptr.hbm [resolvable:$true] %s40
      %s42 = sshll.u32 [#allocation7], 4
      %s43 = int_to_ptr.vmem [resolvable:$true] %s42
      %45 = dma.hbm_to_vmem [thread:$0]  %s41, 128, %s43, [#allocation6]
    $region13: #{neural_net_forward.1} parent=1 // pred_fallthru
      _
    // Predicated region
    $region14: #{neural_net_forward.1} parent=1 // pred_check
      _
    $region15: #{neural_net_forward.1} parent=1 // pred_check_branch
      %47 = sbr.rel (0) target = $region17
    $region16: #{neural_net_forward.1} parent=1 // pred_region
      %49 = dma.done [#allocation3], 128
    $region17: #{neural_net_forward.1} parent=1 // pred_fallthru
      _
    // Predicated region
    $region18: #{neural_net_forward.1} parent=1 // pred_check
      _
    $region19: #{neural_net_forward.1} parent=1 // pred_check_branch
      %51 = sbr.rel (0) target = $region21
    $region20: #{neural_net_forward.1} parent=1 // pred_region
      %53 = dma.done [#allocation6], 6144
    $region21: #{neural_net_forward.1} parent=1 // pred_fallthru
      _
    // Predicated region
    $region22: #{neural_net_forward.1} parent=1 // pred_check
      _
    $region23: #{neural_net_forward.1} parent=1 // pred_check_branch
      %55 = sbr.rel (0) target = $region25
    $region24: #{neural_net_forward.1} parent=1 // pred_region
      %57 = dma.done [#allocation6], 128
    $region25: #{neural_net_forward.1} parent=1 // pred_fallthru
      _
    %v58 = vld [vmem:[#allocation2] sm:$0xff]
    %v59 = vld [vmem:[#allocation7] sm:$0xff]
    %v60 = vld [vmem:[#allocation5] sm:$0xff]
    %v61 = vld [vmem:[#allocation5 + $0x8] sm:$0xff]
    %v62 = vperm.slane %v59, 0
    %vm63 = vcmask 130048
    %v65 = vsel %vm63, %v58, 0
    %67 = vmatpush.msra.mxu0 0.0
    %68 = vmatpush.msra.mxu0 0.0
    %69 = vmatpush.msra.mxu0 0.0
    %70 = vmatpush.msra.mxu0 0.0
    %71 = vmatpush.msra.mxu0 0.0
    %72 = vmatpush.msra.mxu0 0.0
    %73 = vmatpush.msra.mxu0 0.0
    %74 = vmatpush.msra.mxu0 0.0
    %75 = vmatpush.msra.mxu0 0.0
    %76 = vmatpush.msra.mxu0 0.0
    %77 = vmatpush.msra.mxu0 0.0
    %78 = vmatpush.msra.mxu0 0.0
    %79 = vmatpush.msra.mxu0 0.0
    %80 = vmatpush.msra.mxu0 0.0
    %81 = vmatpush.msra.mxu0 %v61
    %82 = vmatpush.msra.mxu0 %v60
    %83 = vmatmul.f32.gmra.mxu0 %v65
    %v84 = vpop.f32.mrf.mxu0
    %v85 = vadd.f32 %v62, %v84
    %86 = vdwg.mxu0
    %v87 = vmul.f32 %v85, %v85
    %v88 = vrot.slane %v85, 4
    %v89 = vadd.f32 %v85, %v88
    %v90 = vrot.slane %v89, 2
    %v91 = vadd.f32 %v89, %v90
    %v92 = vrot.slane %v91, 1
    %v93 = vadd.f32 %v91, %v92
    %v94 = vrot.slane %v87, 4
    %v95 = vadd.f32 %v87, %v94
    %v96 = vrot.slane %v95, 2
    %v97 = vadd.f32 %v95, %v96
    %v98 = vrot.slane %v97, 1
    %v99 = vadd.f32 %v97, %v98
    %v100 = vmul.f32 %v93, 0.125
    %v101 = vmul.f32 %v99, 0.125
    %v102 = vmul.f32 %v100, %v100
    %v103 = vsub.f32 %v101, %v102
    %v104 = vadd.f32 %v103, 1e-05
    %v105 = vrsqrt.pop %v104
    %v106 = vmul.f32 %v105, %v104
    %v107 = vmul.f32 %v106, %v105
    %v108 = vmul.f32 0.5, %v107
    %v109 = vsub.f32 1.5, %v108
    %v110 = vmul.f32 %v105, %v109
    %vm111 = vweird.f32 %v104
    %vm112 = vweird.f32 %v105
    %vm113 = vmor %vm111, %vm112
    %v114 = vsel %vm113, %v105, %v110
    %v115 = vmul.f32 %v59, %v114
    %v116 = vmul.f32 %v100, %v115
    %v118 = vrot.slane %v116, 7
    %v120 = vsub.f32 %v59, %v118
    %v121 = vperm.slane %v115, 1
    %v122 = vmul.f32 %v85, %v121
    %v123 = vperm.slane %v120, 2
    %v124 = vadd.f32 %v122, %v123
    %v125 = vmax.f32 %v124, 0.0
    %s126 = scalar_lea.vmem [#allocation5], 128
    %v127 = vld [vmem:[%s126] sm:$0xff]
    %v128 = vld [vmem:[%s126 + $0x8] sm:$0xff]
    %v129 = vld [vmem:[%s126 + $0x10] sm:$0xff]
    %v130 = vld [vmem:[%s126 + $0x18] sm:$0xff]
    %v131 = vld [vmem:[%s126 + $0x20] sm:$0xff]
    %v132 = vld [vmem:[%s126 + $0x28] sm:$0xff]
    %v133 = vld [vmem:[%s126 + $0x30] sm:$0xff]
    %v134 = vld [vmem:[%s126 + $0x38] sm:$0xff]
    %v135 = vld [vmem:[%s126 + $0x40] sm:$0xff]
    %v136 = vld [vmem:[%s126 + $0x48] sm:$0xff]
    %v137 = vld [vmem:[%s126 + $0x50] sm:$0xff]
    %v138 = vld [vmem:[%s126 + $0x58] sm:$0xff]
    %v139 = vld [vmem:[%s126 + $0x60] sm:$0xff]
    %v140 = vld [vmem:[%s126 + $0x68] sm:$0xff]
    %v141 = vld [vmem:[%s126 + $0x70] sm:$0xff]
    %v142 = vld [vmem:[%s126 + $0x78] sm:$0xff]
    %v143 = vperm.slane %v59, 3
    %144 = vmatpush.msra.mxu0 %v142
    %145 = vmatpush.msra.mxu0 %v141
    %146 = vmatpush.msra.mxu0 %v140
    %147 = vmatpush.msra.mxu0 %v139
    %148 = vmatpush.msra.mxu0 %v138
    %149 = vmatpush.msra.mxu0 %v137
    %150 = vmatpush.msra.mxu0 %v136
    %151 = vmatpush.msra.mxu0 %v135
    %152 = vmatpush.msra.mxu0 %v134
    %153 = vmatpush.msra.mxu0 %v133
    %154 = vmatpush.msra.mxu0 %v132
    %155 = vmatpush.msra.mxu0 %v131
    %156 = vmatpush.msra.mxu0 %v130
    %157 = vmatpush.msra.mxu0 %v129
    %158 = vmatpush.msra.mxu0 %v128
    %159 = vmatpush.msra.mxu0 %v127
    %160 = vmatmul.f32.gmra.mxu0 %v125
    %v161 = vpop.f32.mrf.mxu0
    %v162 = vadd.f32 %v143, %v161
    %163 = vdwg.mxu0
    %v164 = vmul.f32 %v162, %v162
    %v165 = vrot.slane %v162, 4
    %v166 = vadd.f32 %v162, %v165
    %v167 = vrot.slane %v166, 2
    %v168 = vadd.f32 %v166, %v167
    %v169 = vrot.slane %v168, 1
    %v170 = vadd.f32 %v168, %v169
    %v171 = vrot.slane %v164, 4
    %v172 = vadd.f32 %v164, %v171
    %v173 = vrot.slane %v172, 2
    %v174 = vadd.f32 %v172, %v173
    %v175 = vrot.slane %v174, 1
    %v176 = vadd.f32 %v174, %v175
    %v177 = vmul.f32 %v170, 0.125
    %v178 = vmul.f32 %v176, 0.125
    %v179 = vmul.f32 %v177, %v177
    %v180 = vsub.f32 %v178, %v179
    %v181 = vadd.f32 %v180, 1e-05
    %v182 = vrsqrt.pop %v181
    %v183 = vmul.f32 %v182, %v181
    %v184 = vmul.f32 %v183, %v182
    %v185 = vmul.f32 0.5, %v184
    %v186 = vsub.f32 1.5, %v185
    %v187 = vmul.f32 %v182, %v186
    %vm188 = vweird.f32 %v181
    %vm189 = vweird.f32 %v182
    %vm190 = vmor %vm188, %vm189
    %v191 = vsel %vm190, %v182, %v187
    %v192 = vmul.f32 %v59, %v191
    %v193 = vmul.f32 %v177, %v192
    %v195 = vrot.slane %v193, 7
    %v197 = vsub.f32 %v59, %v195
    %v198 = vperm.slane %v192, 4
    %v199 = vmul.f32 %v162, %v198
    %v200 = vperm.slane %v197, 5
    %v201 = vadd.f32 %v199, %v200
    %v202 = vtanh.pop %v201
    %s203 = scalar_lea.vmem [#allocation5], 256
    %v204 = vld [vmem:[%s203] sm:$0xff]
    %v205 = vld [vmem:[%s203 + $0x8] sm:$0xff]
    %v206 = vld [vmem:[%s203 + $0x10] sm:$0xff]
    %v207 = vld [vmem:[%s203 + $0x18] sm:$0xff]
    %v208 = vld [vmem:[%s203 + $0x20] sm:$0xff]
    %v209 = vld [vmem:[%s203 + $0x28] sm:$0xff]
    %v210 = vld [vmem:[%s203 + $0x30] sm:$0xff]
    %v211 = vld [vmem:[%s203 + $0x38] sm:$0xff]
    %v212 = vld [vmem:[%s203 + $0x40] sm:$0xff]
    %v213 = vld [vmem:[%s203 + $0x48] sm:$0xff]
    %v214 = vld [vmem:[%s203 + $0x50] sm:$0xff]
    %v215 = vld [vmem:[%s203 + $0x58] sm:$0xff]
    %v216 = vld [vmem:[%s203 + $0x60] sm:$0xff]
    %v217 = vld [vmem:[%s203 + $0x68] sm:$0xff]
    %v218 = vld [vmem:[%s203 + $0x70] sm:$0xff]
    %v219 = vld [vmem:[%s203 + $0x78] sm:$0xff]
    %v220 = vperm.slane %v59, 6
    %221 = vmatpush.msra.mxu0 %v219
    %222 = vmatpush.msra.mxu0 %v218
    %223 = vmatpush.msra.mxu0 %v217
    %224 = vmatpush.msra.mxu0 %v216
    %225 = vmatpush.msra.mxu0 %v215
    %226 = vmatpush.msra.mxu0 %v214
    %227 = vmatpush.msra.mxu0 %v213
    %228 = vmatpush.msra.mxu0 %v212
    %229 = vmatpush.msra.mxu0 %v211
    %230 = vmatpush.msra.mxu0 %v210
    %231 = vmatpush.msra.mxu0 %v209
    %232 = vmatpush.msra.mxu0 %v208
    %233 = vmatpush.msra.mxu0 %v207
    %234 = vmatpush.msra.mxu0 %v206
    %235 = vmatpush.msra.mxu0 %v205
    %236 = vmatpush.msra.mxu0 %v204
    %237 = vmatmul.f32.gmra.mxu0 %v202
    %v238 = vpop.f32.mrf.mxu0
    %v239 = vadd.f32 %v220, %v238
    %240 = vdwg.mxu0
    %241 = vst [vmem:[#allocation8] sm:$0xff] %v239
    // Predicated region
    $region26: #{neural_net_forward.1} parent=1 // pred_check
      _
    $region27: #{neural_net_forward.1} parent=1 // pred_check_branch
      %243 = sbr.rel (0) target = $region29
    $region28: #{neural_net_forward.1} parent=1 // pred_region
      %245 = vsyncadd [#allocation4], 0
      %s247 = sshll.u32 [#allocation8], 4
      %s248 = int_to_ptr.vmem [resolvable:$true] %s247
      %s249 = sshll.u32 %s3, 4
      %s250 = int_to_ptr.hbm [resolvable:$true] %s249
      %252 = dma.vmem_to_hbm [thread:$0]  %s248, 128, %s250, [#allocation4]
    $region29: #{neural_net_forward.1} parent=1 // pred_fallthru
      _
    // Predicated region
    $region30: #{neural_net_forward.1} parent=1 // pred_check
      _
    $region31: #{neural_net_forward.1} parent=1 // pred_check_branch
      %254 = sbr.rel (0) target = $region33
    $region32: #{neural_net_forward.1} parent=1 // pred_region
      %256 = dma.done [#allocation4], 128
    $region33: #{neural_net_forward.1} parent=1 // pred_fallthru
      _
    %257 = vsyncpa [#allocation3], 1
    %258 = vsyncpa [#allocation6], 1
    %259 = vsyncpa [#allocation4], 1

</llo_original>
